<compile_context>
chip_gen: v6e
topology: v6e:2x2x1
jax: 0.10.0
libtpu: 0.0.40
codegen_flags: <defaults>
</compile_context>

<pallas_src>
import functools
import math

import jax
import jax.numpy as jnp
from jax.experimental import pallas as pl
from jax.experimental.pallas import tpu as pltpu


# ------------------------------ kernel helpers ------------------------------


def _valid_mask(shape, start, s_valid):
    """Mask over a (C, *spatial) block: True where start + flat-spatial < s_valid."""
    if len(shape) == 2:                      # (C, tile_s) lane-only layout
        flat = jax.lax.broadcasted_iota(jnp.int32, shape, 1)
    else:                                    # (C, rows, 128) dense layout
        flat = (jax.lax.broadcasted_iota(jnp.int32, shape, 1) * shape[2]
                + jax.lax.broadcasted_iota(jnp.int32, shape, 2))
    return (start + flat) < s_valid


def _reduce_to_8x128(acc):
    """Reduce a (C, *spatial) f32 accumulator to one (8,128) partial block."""
    if acc.ndim == 3 and acc.shape[1] % 8 == 0 and acc.shape[2] == 128:
        r = jnp.sum(acc, axis=0)                     # (rows, 128)  - VPU adds
        return r.reshape(-1, 8, 128).sum(axis=0)     # (8, 128)     - VPU adds
    total = jnp.sum(acc)                             # once-per-batch scalar
    ri = jax.lax.broadcasted_iota(jnp.int32, (8, 128), 0)
    ci = jax.lax.broadcasted_iota(jnp.int32, (8, 128), 1)
    return jnp.where((ri == 0) & (ci == 0), total, jnp.float32(0.0))


def _kl_kernel(x_ref, t_ref, out_ref, acc_ref, *, eps, is_label, s_valid,
               elems_per_step, need_mask):
    s = pl.program_id(1)
    n_s = pl.num_programs(1)

    x = x_ref[0].astype(jnp.float32)                 # (C, *spatial_block)

    # log_softmax over the channel axis (axis 0).
    m = jnp.max(x, axis=0, keepdims=True)
    lse = m + jnp.log(jnp.sum(jnp.exp(x - m), axis=0, keepdims=True))
    log_p = x - lse

    if is_label:
        # clamp(one_hot(label), eps):
        #   true class : 1   * (log 1   - log_p) = -log_p
        #   others     : eps * (log eps - log_p)
        # (out-of-range labels yield all-eps rows; torch scatter_ would error)
        lbl = t_ref[0].astype(jnp.int32)             # (1, *spatial_block)
        c_iota = jax.lax.broadcasted_iota(jnp.int32, x.shape, 0)
        kl = jnp.where(c_iota == lbl, -log_p, eps * (math.log(eps) - log_p))
    else:
        t = jnp.maximum(t_ref[0].astype(jnp.float32), eps)
        kl = t * (jnp.log(t) - log_p)

    @pl.when(s == 0)
    def _():
        acc_ref[...] = jnp.zeros_like(acc_ref)

    if need_mask:
        # Boundary block has garbage lanes (no wrapper padding); mask them out,
        # but only on the last reduction step.
        @pl.when(s < n_s - 1)
        def _():
            acc_ref[...] += kl

        @pl.when(s == n_s - 1)
        def _():
            valid = _valid_mask(x.shape, s * elems_per_step, s_valid)
            acc_ref[...] += jnp.where(valid, kl, 0.0)
    else:
        acc_ref[...] += kl

    @pl.when(s == n_s - 1)
    def _():
        out_ref[0] = _reduce_to_8x128(acc_ref[...])


# --------------------------------- wrapper ----------------------------------


def _vmem_budgets():
    """(tile-sizing budget, vmem_limit_bytes) derived from the chip generation."""
    cap = 128 * 1024 * 1024
    try:
        cap = int(getattr(pltpu.get_tpu_info(), "vmem_capacity_bytes", cap)) or cap
    except Exception:
        pass
    if cap <= 64 * 1024 * 1024:          # v7x-class: 64 MiB physical per core
        return 12 * 1024 * 1024, 32 * 1024 * 1024
    return 24 * 1024 * 1024, 64 * 1024 * 1024   # v5e / v6e: 128 MiB physical


def _tile_elems_cap(C, x_bytes, t_bytes_per_elem, budget, max_elems):
    # Per-spatial-element footprint: double-buffered inputs, f32 scratch
    # accumulator, plus ~6 live (C, tile) f32 log-softmax intermediates.
    per_elem = 2 * C * x_bytes + 2 * t_bytes_per_elem + 4 * C + 24 * C
    return int(max(min(budget // per_elem, max_elems), 1024))


def kl_divergence_loss_3d(inp, target, *, reduction="mean", eps=1e-6,
                          max_tile_elems=65536):
    """JAX/Pallas equivalent of KLDivergenceLoss3D.forward."""
    assert reduction in ("mean", "sum", "batchmean")
    assert inp.ndim == 5, "input must be 5D [B, C, D, H, W]"
    B, C = inp.shape[0], inp.shape[1]
    S = inp.shape[2] * inp.shape[3] * inp.shape[4]

    # Branch dispatch mirrors the PyTorch module (note: a [B,1,D,H,W] label
    # tensor with a C==1 model routes to the probability branch, as in torch).
    is_label = not (target.ndim == 5 and target.shape[1] == C)

    x = inp.reshape(B, C, S)                         # free reshape, native dtype
    if is_label:
        if target.ndim == 4:
            target = target[:, None]
        assert target.ndim == 5 and target.shape[1] == 1, \
            "label tensor must have 1 channel"
        lbl_dtype = jnp.int8 if C <= 127 else jnp.int32
        tgt = target.reshape(B, 1, S).astype(lbl_dtype)
        t_bytes = jnp.dtype(lbl_dtype).itemsize
    else:
        tgt = target.reshape(B, C, S)
        t_bytes = C * jnp.dtype(tgt.dtype).itemsize

    x_bytes = jnp.dtype(x.dtype).itemsize
    budget, vmem_limit = _vmem_budgets()
    cap = _tile_elems_cap(C, x_bytes, t_bytes, budget, max_tile_elems)

    tc = tgt.shape[1]                                # 1 (label) or C (prob)
    if S % 128 == 0:
        # Dense layout: spatial fills sublanes + lanes, C is a leading axis.
        rows = S // 128
        ts_rows = rows if (cap // 128) >= rows else max(32, (cap // 128 // 32) * 32)
        spatial_block = (ts_rows, 128)
        x = x.reshape(B, C, rows, 128)
        tgt = tgt.reshape(B, tc, rows, 128)
        x_spec = pl.BlockSpec((1, C, ts_rows, 128), lambda b, s: (b, 0, s, 0))
        t_spec = pl.BlockSpec((1, tc, ts_rows, 128), lambda b, s: (b, 0, s, 0))
    else:
        # Fallback lane-dense layout; tail lanes masked in-kernel (no jnp.pad).
        tile_s = min(cap, -(-S // 128) * 128)
        tile_s = max(128, (tile_s // 128) * 128)
        spatial_block = (tile_s,)
        x_spec = pl.BlockSpec((1, C, tile_s), lambda b, s: (b, 0, s))
        t_spec = pl.BlockSpec((1, tc, tile_s), lambda b, s: (b, 0, s))

    elems_per_step = math.prod(spatial_block)
    n_steps = pl.cdiv(S, elems_per_step)
    need_mask = (S % elems_per_step) != 0

    kernel = functools.partial(
        _kl_kernel, eps=float(eps), is_label=is_label, s_valid=S,
        elems_per_step=elems_per_step, need_mask=need_mask)

    # TODO(synk): for B==1 on v7x, add a second "parallel" grid axis over
    # S-chunks so both TensorCores are busy (needs per-chunk boundary masking).
    partials = pl.pallas_call(
        kernel,
        out_shape=jax.ShapeDtypeStruct((B, 8, 128), jnp.float32),
        grid_spec=pltpu.PrefetchScalarGridSpec(
            num_scalar_prefetch=0,
            grid=(B, n_steps),
            in_specs=[x_spec, t_spec],
            out_specs=pl.BlockSpec((1, 8, 128), lambda b, s: (b, 0, 0)),
            scratch_shapes=[pltpu.VMEM((C,) + spatial_block, jnp.float32)],
        ),
        compiler_params=pltpu.CompilerParams(
            dimension_semantics=("parallel", "arbitrary"),
            vmem_limit_bytes=vmem_limit,
        ),
    )(x, tgt)

    kl_sum = jnp.sum(partials, dtype=jnp.float32)
    if reduction == "mean":
        return kl_sum / (B * C * S)
    if reduction == "sum":
        return kl_sum
    return kl_sum / B                                # batchmean


# -------------------------------- reference ----------------------------------


def _reference(inp, target_probs, reduction, eps):
    log_p = jax.nn.log_softmax(inp.astype(jnp.float32), axis=1)
    t = jnp.maximum(target_probs.astype(jnp.float32), eps)
    kl = t * (jnp.log(t) - log_p)
    if reduction == "mean":
        return jnp.mean(kl)
    if reduction == "sum":
        return jnp.sum(kl)
    return jnp.sum(kl) / inp.shape[0]


if __name__ == "__main__":
    key = jax.random.PRNGKey(0)
    k1, k2, k3, k4, k5 = jax.random.split(key, 5)

    # --- probability targets, S = 8*8*8 = 512 (dense [..,S/128,128] path) ---
    B, C, D, H, W = 2, 4, 8, 8, 8
    x = jax.random.normal(k1, (B, C, D, H, W), dtype=jnp.float32)
    t_probs = jax.nn.softmax(
        jax.random.normal(k2, (B, C, D, H, W), dtype=jnp.float32), axis=1)
    for red in ("mean", "sum", "batchmean"):
        loss = jax.block_until_ready(
            kl_divergence_loss_3d(x, t_probs, reduction=red, eps=1e-6))
        ref = _reference(x, t_probs, red, 1e-6)
        assert jnp.allclose(loss, ref, rtol=1e-5, atol=1e-5), (red, loss, ref)

    # --- bf16 logits / targets stream at native width through the kernel ---
    loss_bf16 = jax.block_until_ready(
        kl_divergence_loss_3d(x.astype(jnp.bfloat16),
                              t_probs.astype(jnp.bfloat16),
                              reduction="mean", eps=1e-6))
    ref_bf16 = _reference(x.astype(jnp.bfloat16), t_probs.astype(jnp.bfloat16),
                          "mean", 1e-6)
    assert jnp.allclose(loss_bf16, ref_bf16, rtol=1e-3, atol=1e-4), (loss_bf16, ref_bf16)

    # --- label targets, odd spatial 7*6*5 = 210 (boundary-masked 3D path) ---
    D2, H2, W2 = 7, 6, 5
    x2 = jax.random.normal(k3, (B, C, D2, H2, W2), dtype=jnp.float32)
    labels = jax.random.randint(k4, (B, D2, H2, W2), 0, C)
    loss2 = jax.block_until_ready(
        kl_divergence_loss_3d(x2, labels, reduction="mean", eps=1e-6))
    ref2 = _reference(x2, jax.nn.one_hot(labels, C, axis=1, dtype=jnp.float32),
                      "mean", 1e-6)
    assert jnp.allclose(loss2, ref2, rtol=1e-5, atol=1e-5), (loss2, ref2)

    # --- label targets on the dense path (int8 label stream) ---
    labels3 = jax.random.randint(k5, (B, 1, D, H, W), 0, C)
    loss3 = jax.block_until_ready(
        kl_divergence_loss_3d(x, labels3, reduction="batchmean", eps=1e-6))
    ref3 = _reference(x, jax.nn.one_hot(labels3[:, 0], C, axis=1,
                                        dtype=jnp.float32), "batchmean", 1e-6)
    assert jnp.allclose(loss3, ref3, rtol=1e-5, atol=1e-5), (loss3, ref3)

    print("KERNEL_OK")
</pallas_src>

<mosaic_0001>
module attributes {stable_mosaic.version = 11 : i64} {
  func.func @_kl_kernel(%arg0: i32, %arg1: i32, %arg2: memref<1x4x4x128xf32, #tpu.memory_space<vmem>>, %arg3: memref<1x4x4x128xf32, #tpu.memory_space<vmem>>, %arg4: memref<1x8x128xf32, #tpu.memory_space<vmem>>, %arg5: memref<4x4x128xf32, #tpu.memory_space<vmem>>) attributes {dimension_semantics = [#tpu.dimension_semantics<parallel>, #tpu.dimension_semantics<arbitrary>], iteration_bounds = array<i64: 2, 1>, scalar_prefetch = 0 : i64, scratch_operands = 1 : i64, tpu.core_type = #tpu.core_type<tc>, window_params = [{transform_indices = @transform_0, window_bounds = array<i64: 1, 4, 4, 128>}, {transform_indices = @transform_1, window_bounds = array<i64: 1, 4, 4, 128>}, {transform_indices = @transform_2, window_bounds = array<i64: 1, 8, 128>}]} {
    %c0 = arith.constant 0 : index
    %c0_0 = arith.constant 0 : index
    %c0_1 = arith.constant 0 : index
    %c0_2 = arith.constant 0 : index
    %0 = vector.load %arg2[%c0, %c0_0, %c0_1, %c0_2] : memref<1x4x4x128xf32, #tpu.memory_space<vmem>>, vector<1x4x4x128xf32>
    %1 = vector.shape_cast %0 : vector<1x4x4x128xf32> to vector<4x4x128xf32>
    %cst = arith.constant dense<0xFF800000> : vector<4x128xf32>
    %2 = vector.multi_reduction <maximumf>, %1, %cst [0] : vector<4x4x128xf32> to vector<4x128xf32>
    %3 = vector.shape_cast %2 : vector<4x128xf32> to vector<1x4x128xf32>
    %4 = vector.broadcast %3 : vector<1x4x128xf32> to vector<4x4x128xf32>
    %5 = arith.subf %1, %4 : vector<4x4x128xf32>
    %6 = math.exp %5 : vector<4x4x128xf32>
    %cst_3 = arith.constant dense<0.000000e+00> : vector<4x128xf32>
    %7 = vector.multi_reduction <add>, %6, %cst_3 [0] : vector<4x4x128xf32> to vector<4x128xf32>
    %8 = vector.shape_cast %7 : vector<4x128xf32> to vector<1x4x128xf32>
    %9 = math.log %8 : vector<1x4x128xf32>
    %10 = arith.addf %3, %9 : vector<1x4x128xf32>
    %11 = vector.broadcast %10 : vector<1x4x128xf32> to vector<4x4x128xf32>
    %12 = arith.subf %1, %11 : vector<4x4x128xf32>
    %c0_4 = arith.constant 0 : index
    %c0_5 = arith.constant 0 : index
    %c0_6 = arith.constant 0 : index
    %c0_7 = arith.constant 0 : index
    %13 = vector.load %arg3[%c0_4, %c0_5, %c0_6, %c0_7] : memref<1x4x4x128xf32, #tpu.memory_space<vmem>>, vector<1x4x4x128xf32>
    %14 = vector.shape_cast %13 : vector<1x4x4x128xf32> to vector<4x4x128xf32>
    %cst_8 = arith.constant 9.99999997E-7 : f32
    %15 = vector.broadcast %cst_8 : f32 to vector<4x4x128xf32>
    %16 = arith.maximumf %14, %15 : vector<4x4x128xf32>
    %17 = math.log %16 : vector<4x4x128xf32>
    %18 = arith.subf %17, %12 : vector<4x4x128xf32>
    %19 = arith.mulf %16, %18 : vector<4x4x128xf32>
    %c0_i32 = arith.constant 0 : i32
    %20 = arith.cmpi eq, %arg1, %c0_i32 : i32
    %21 = arith.extui %20 : i1 to i32
    %c0_i32_9 = arith.constant 0 : i32
    %22 = arith.cmpi ne, %21, %c0_i32_9 : i32
    scf.if %22 {
      %cst_18 = arith.constant 0.000000e+00 : f32
      %29 = vector.broadcast %cst_18 : f32 to vector<4x4x128xf32>
      %c0_19 = arith.constant 0 : index
      %c0_20 = arith.constant 0 : index
      %c0_21 = arith.constant 0 : index
      %30 = vector.load %arg5[%c0_19, %c0_20, %c0_21] : memref<4x4x128xf32, #tpu.memory_space<vmem>>, vector<4x4x128xf32>
      tpu.vector_store %arg5[%c0_19, %c0_20, %c0_21], %29 {strides = array<i32>} : memref<4x4x128xf32, #tpu.memory_space<vmem>>, vector<4x4x128xf32>,
    } else {
    }
    %c0_10 = arith.constant 0 : index
    %c0_11 = arith.constant 0 : index
    %c0_12 = arith.constant 0 : index
    %23 = vector.load %arg5[%c0_10, %c0_11, %c0_12] : memref<4x4x128xf32, #tpu.memory_space<vmem>>, vector<4x4x128xf32>
    %24 = arith.addf %23, %19 : vector<4x4x128xf32>
    %c0_13 = arith.constant 0 : index
    %c0_14 = arith.constant 0 : index
    %c0_15 = arith.constant 0 : index
    %25 = vector.load %arg5[%c0_13, %c0_14, %c0_15] : memref<4x4x128xf32, #tpu.memory_space<vmem>>, vector<4x4x128xf32>
    tpu.vector_store %arg5[%c0_13, %c0_14, %c0_15], %24 {strides = array<i32>} : memref<4x4x128xf32, #tpu.memory_space<vmem>>, vector<4x4x128xf32>,
    %c0_i32_16 = arith.constant 0 : i32
    %26 = arith.cmpi eq, %arg1, %c0_i32_16 : i32
    %27 = arith.extui %26 : i1 to i32
    %c0_i32_17 = arith.constant 0 : i32
    %28 = arith.cmpi ne, %27, %c0_i32_17 : i32
    scf.if %28 {
      %c0_18 = arith.constant 0 : index
      %c0_19 = arith.constant 0 : index
      %c0_20 = arith.constant 0 : index
      %29 = vector.load %arg5[%c0_18, %c0_19, %c0_20] : memref<4x4x128xf32, #tpu.memory_space<vmem>>, vector<4x4x128xf32>
      %30 = vector.shape_cast %29 : vector<4x4x128xf32> to vector<1x4x4x128xf32>
      %cst_21 = arith.constant dense<0.000000e+00> : vector<1xf32>
      %31 = vector.multi_reduction <add>, %30, %cst_21 [1, 2, 3] : vector<1x4x4x128xf32> to vector<1xf32>
      %32 = vector.shape_cast %31 : vector<1xf32> to vector<1x1x1x1xf32>
      %33 = vector.extract %32[0, 0, 0, 0] : f32 from vector<1x1x1x1xf32>
      %34 = tpu.iota {dimensions = array<i32: 0>} : vector<8x128xi32>
      %35 = tpu.iota {dimensions = array<i32: 1>} : vector<8x128xi32>
      %c0_i32_22 = arith.constant 0 : i32
      %36 = vector.broadcast %c0_i32_22 : i32 to vector<8x128xi32>
      %37 = arith.cmpi eq, %34, %36 : vector<8x128xi32>
      %c0_i32_23 = arith.constant 0 : i32
      %38 = vector.broadcast %c0_i32_23 : i32 to vector<8x128xi32>
      %39 = arith.cmpi eq, %35, %38 : vector<8x128xi32>
      %40 = arith.andi %37, %39 : vector<8x128xi1>
      %cst_24 = arith.constant 0.000000e+00 : f32
      %41 = vector.broadcast %33 : f32 to vector<8x128xf32>
      %42 = vector.broadcast %cst_24 : f32 to vector<8x128xf32>
      %43 = arith.select %40, %41, %42 : vector<8x128xi1>, vector<8x128xf32>
      %c0_25 = arith.constant 0 : index
      %c0_26 = arith.constant 0 : index
      %c0_27 = arith.constant 0 : index
      %44 = vector.load %arg4[%c0_25, %c0_26, %c0_27] : memref<1x8x128xf32, #tpu.memory_space<vmem>>, vector<1x8x128xf32>
      %45 = vector.shape_cast %44 : vector<1x8x128xf32> to vector<8x128xf32>
      %46 = vector.shape_cast %43 : vector<8x128xf32> to vector<1x8x128xf32>
      tpu.vector_store %arg4[%c0_25, %c0_26, %c0_27], %46 {strides = array<i32>} : memref<1x8x128xf32, #tpu.memory_space<vmem>>, vector<1x8x128xf32>,
    } else {
    }
    return
  }
  func.func @transform_0(%arg0: i32, %arg1: i32) -> (i32, i32, i32, i32) {
    %c0_i32 = arith.constant 0 : i32
    %c0_i32_0 = arith.constant 0 : i32
    %c0_i32_1 = arith.constant 0 : i32
    return %arg0, %c0_i32, %arg1, %c0_i32_0 : i32, i32, i32, i32
  }
  func.func @transform_1(%arg0: i32, %arg1: i32) -> (i32, i32, i32, i32) {
    %c0_i32 = arith.constant 0 : i32
    %c0_i32_0 = arith.constant 0 : i32
    %c0_i32_1 = arith.constant 0 : i32
    return %arg0, %c0_i32, %arg1, %c0_i32_0 : i32, i32, i32, i32
  }
  func.func @transform_2(%arg0: i32, %arg1: i32) -> (i32, i32, i32) {
    %c0_i32 = arith.constant 0 : i32
    %c0_i32_0 = arith.constant 0 : i32
    %c0_i32_1 = arith.constant 0 : i32
    return %arg0, %c0_i32, %c0_i32_0 : i32, i32, i32
  }
}

</mosaic_0001>

<llo_original>
// kernel: tpu_custom_call.1
$region0: #{tpu_custom_call.1}
  #allocation0 [shape = 'u32[]', space=smem, size = 0x4, offset = 0x4, fixed_abs, tag = 'smem constant byte address 0x4 - core index']
  #allocation1 [shape = 'u32[144,128]{1,0:T(1,128)}', space=vmem, size = 0x12000, scoped, tag = 'internal scratch']
  #allocation2 [shape = 'f32[4,4,128]{2,1,0:T(4,128)}', space=vmem, size = 0x2000, scoped, tag = 'scratch operand']
  %s0 = inlined_call_operand.hbm [shape: f32[2,4,4,128], index: 0, kind: input, shape index: {}]
  %s1 = inlined_call_operand.hbm [shape: f32[2,4,4,128], index: 1, kind: input, shape index: {}]
  %s2 = inlined_call_operand.hbm [shape: f32[2,8,128], index: 2, kind: output, shape index: {}]
  %s3 = sld [smem:[#allocation0]]
  $region57: #{tpu_custom_call.1} parent=0
    _
  %s5 = ssub.s32 1, %s3
  %s6 = scalar_select 0, %s5, %s3
  $region1: #{tpu_custom_call.1} parent=0
    #allocation3 [shape = 'u8[16384]{0}', space=vmem, size = 0x4000, scoped, tag = 'input window, operand 0']
    #allocation4 [shape = 's32[2]{0}', space=sflag, size = 0x8, scoped, tag = 'scoped memory for tpu_custom_call.1']
    #allocation5 [shape = 's32[2]{0}', space=sflag, size = 0x8, scoped, tag = 'scoped memory for tpu_custom_call.1']
    #allocation6 [shape = 'u8[16384]{0}', space=vmem, size = 0x4000, scoped, tag = 'input window, operand 1']
    #allocation7 [shape = 's32[2]{0}', space=sflag, size = 0x8, scoped, tag = 'scoped memory for tpu_custom_call.1']
    #allocation8 [shape = 'u8[8192]{0}', space=vmem, size = 0x2000, scoped, tag = 'output window, operand 0']
    %7 = vsyncpa [#allocation4], 0
    %s8 = scalar_lea.sflag [#allocation4], 1
    %9 = vsyncpa %s8, 0
    %10 = vsyncpa [#allocation7], 0
    %s11 = scalar_lea.sflag [#allocation7], 1
    %12 = vsyncpa %s11, 0
    %13 = vsyncpa [#allocation5], 0
    %s14 = scalar_lea.sflag [#allocation5], 1
    %15 = vsyncpa %s14, 0
    loop: start=0, step=1, limit=4
    $region2: #{tpu_custom_call.1} parent=1 // loop_pre_header
      _
    $region3: #{tpu_custom_call.1} parent=1 // loop_header
      %s17 = sphi 0, %s21
      %p18 = scmp.ge.s32.totalorder %s17, 4
      %s24 = sphi 0, %s36
      %s25 = sphi 0, %s32
      %s26 = sphi 0, %s24
      %s27 = sphi 0, %s25
      %s28 = sphi 0, %s26
      %s29 = sphi 0, %s27
      %s41 = sphi 0, %s43
      %s44 = sphi 0, %s41
      %s45 = sphi 0, %s44
      %s61 = sphi 0, %s45
      %s69 = sphi 0, %s71
      %s72 = sphi 0, %s69
      %s73 = sphi 0, %s72
      %s89 = sphi 0, %s73
      %s95 = sphi 0, %s97
      %s98 = sphi 0, %s95
      %s99 = sphi 0, %s98
      %s115 = sphi 0, %s99
    $region4: #{tpu_custom_call.1} parent=1 // loop_header_branch
      %20 = sbr.rel (%p18) target = $region8
    $region5: #{tpu_custom_call.1} parent=1 // loop_body
      %s22 = ssub.s32 %s17, 1
      %s23 = ssub.s32 %s17, 2
      %s30 = sadd.s32 1, %s25
      %p31 = scmp.ge.s32.totalorder %s30, 1
      %s32 = scalar_select %p31, 0, %s30
      %s33 = sadd.s32 1, %s24
      %s34 = scalar_select %p31, %s33, %s24
      %p35 = scmp.ge.s32.totalorder %s34, 2
      %s36 = scalar_select %p35, 0, %s34
      %s37 = ssub.s32 %s24, %s36
      %s38 = ssub.s32 %s25, %s32
      %s39 = sor.u32 %s37, %s38
      %p40 = scmp.eq.s32.totalorder %s39, 0
      %s42 = sadd.s32 %s41, 1
      %s43 = scalar_select %p40, %s41, %s42
      %p46 = pneg %p40
      %p47 = scmp.eq.s32.totalorder %s17, 1
      %p48 = por %p46, %p47
      %p49 = scmp.ne.s32.totalorder %s41, %s44
      %p50 = scmp.eq.s32.totalorder %s17, 0
      %p51 = por %p49, %p50
      %p52 = scmp.ne.s32.totalorder %s41, %s44
      %p53 = scmp.eq.s32.totalorder %s22, 1
      %p54 = por %p52, %p53
      %p55 = scmp.ne.s32.totalorder %s44, %s45
      %p56 = scmp.eq.s32.totalorder %s22, 0
      %p57 = por %p55, %p56
      %p58 = scmp.ne.s32.totalorder %s44, %s45
      %p59 = scmp.eq.s32.totalorder %s23, 1
      %p60 = por %p58, %p59
      %p62 = scmp.ne.s32.totalorder %s45, %s61
      %p63 = scmp.eq.s32.totalorder %s23, 0
      %p64 = por %p62, %p63
      %s65 = ssub.s32 %s24, %s36
      %s66 = ssub.s32 %s25, %s32
      %s67 = sor.u32 %s65, %s66
      %p68 = scmp.eq.s32.totalorder %s67, 0
      %s70 = sadd.s32 %s69, 1
      %s71 = scalar_select %p68, %s69, %s70
      %p74 = pneg %p68
      %p75 = scmp.eq.s32.totalorder %s17, 1
      %p76 = por %p74, %p75
      %p77 = scmp.ne.s32.totalorder %s69, %s72
      %p78 = scmp.eq.s32.totalorder %s17, 0
      %p79 = por %p77, %p78
      %p80 = scmp.ne.s32.totalorder %s69, %s72
      %p81 = scmp.eq.s32.totalorder %s22, 1
      %p82 = por %p80, %p81
      %p83 = scmp.ne.s32.totalorder %s72, %s73
      %p84 = scmp.eq.s32.totalorder %s22, 0
      %p85 = por %p83, %p84
      %p86 = scmp.ne.s32.totalorder %s72, %s73
      %p87 = scmp.eq.s32.totalorder %s23, 1
      %p88 = por %p86, %p87
      %p90 = scmp.ne.s32.totalorder %s73, %s89
      %p91 = scmp.eq.s32.totalorder %s23, 0
      %p92 = por %p90, %p91
      %s93 = ssub.s32 %s24, %s36
      %p94 = scmp.eq.s32.totalorder %s93, 0
      %s96 = sadd.s32 %s95, 1
      %s97 = scalar_select %p94, %s95, %s96
      %p100 = pneg %p94
      %p101 = scmp.eq.s32.totalorder %s17, 1
      %p102 = por %p100, %p101
      %p103 = scmp.ne.s32.totalorder %s95, %s98
      %p104 = scmp.eq.s32.totalorder %s17, 0
      %p105 = por %p103, %p104
      %p106 = scmp.ne.s32.totalorder %s95, %s98
      %p107 = scmp.eq.s32.totalorder %s22, 1
      %p108 = por %p106, %p107
      %p109 = scmp.ne.s32.totalorder %s98, %s99
      %p110 = scmp.eq.s32.totalorder %s22, 0
      %p111 = por %p109, %p110
      %p112 = scmp.ne.s32.totalorder %s98, %s99
      %p113 = scmp.eq.s32.totalorder %s23, 1
      %p114 = por %p112, %p113
      %p116 = scmp.ne.s32.totalorder %s99, %s115
      %p117 = scmp.eq.s32.totalorder %s23, 0
      %p118 = por %p116, %p117
      %p119 = scmp.le.s32.totalorder 1, %s17
      %p120 = scmp.lt.s32.totalorder %s17, 3
      %p121 = pnand %p119, %p120
      %p122 = pneg %p121
      // Predicated region
      $region9: #{tpu_custom_call.1} parent=5 // pred_check
        _
      $region10: #{tpu_custom_call.1} parent=5 // pred_check_branch
        %124 = sbr.rel (%p121) target = $region12
      $region11: #{tpu_custom_call.1} parent=5 // pred_region
        %s125 = ssub.s32 %s17, 1
      $region12: #{tpu_custom_call.1} parent=5 // pred_fallthru
        _
      %p126 = scmp.lt.s32.totalorder %s17, 2
      // Predicated region
      $region13: #{tpu_custom_call.1} parent=5 // pred_check
        %p127 = pneg %p126
      $region14: #{tpu_custom_call.1} parent=5 // pred_check_branch
        %129 = sbr.rel (%p127) target = $region16
      $region15: #{tpu_custom_call.1} parent=5 // pred_region
        // Predicated region
        $region17: #{tpu_custom_call.1} parent=15 // pred_check
          %p130 = pneg %p51
        $region18: #{tpu_custom_call.1} parent=15 // pred_check_branch
          %132 = sbr.rel (%p130) target = $region20
        $region19: #{tpu_custom_call.1} parent=15 // pred_region
          %s133 = sand.u32 %s41, 1
          %s134 = scalar_lea.sflag [#allocation4], %s133
          %s135 = sand.u32 %s41, 1
          %s136 = smul.addr %s135, 16
          %s137 = scalar_lea.vmem [#allocation3], %s136
          %s139 = ssub.s32 256, 256
          %140 = vsyncadd %s134, %s139
          %s141 = smul.addr %s24, 4
          %s142 = sadd.s32 %s25, %s141
          %s143 = smul.addr %s142, 64
          %s144 = scalar_lea.hbm %s0, %s143
          %s145 = sshll.u32 %s137, 4
          %s146 = int_to_ptr.vmem [resolvable:$true] %s145
          %151 = dma.hbm_to_vmem [thread:$0]  %s144, 256, %s146, %s134, 64, 64, 4
        $region20: #{tpu_custom_call.1} parent=15 // pred_fallthru
          _
        // Predicated region
        $region21: #{tpu_custom_call.1} parent=15 // pred_check
          %p152 = pneg %p79
        $region22: #{tpu_custom_call.1} parent=15 // pred_check_branch
          %154 = sbr.rel (%p152) target = $region24
        $region23: #{tpu_custom_call.1} parent=15 // pred_region
          %s155 = sand.u32 %s69, 1
          %s156 = scalar_lea.sflag [#allocation7], %s155
          %s157 = sand.u32 %s69, 1
          %s158 = smul.addr %s157, 16
          %s159 = scalar_lea.vmem [#allocation6], %s158
          %s161 = ssub.s32 256, 256
          %162 = vsyncadd %s156, %s161
          %s163 = smul.addr %s24, 4
          %s164 = sadd.s32 %s25, %s163
          %s165 = smul.addr %s164, 64
          %s166 = scalar_lea.hbm %s1, %s165
          %s167 = sshll.u32 %s159, 4
          %s168 = int_to_ptr.vmem [resolvable:$true] %s167
          %173 = dma.hbm_to_vmem [thread:$0]  %s166, 256, %s168, %s156, 64, 64, 4
        $region24: #{tpu_custom_call.1} parent=15 // pred_fallthru
          _
      $region16: #{tpu_custom_call.1} parent=5 // pred_fallthru
        _
      %p174 = scmp.le.s32.totalorder 1, %s17
      %p175 = scmp.lt.s32.totalorder %s17, 3
      %p176 = pnand %p174, %p175
      %p177 = pneg %p176
      // Predicated region
      $region25: #{tpu_custom_call.1} parent=5 // pred_check
        _
      $region26: #{tpu_custom_call.1} parent=5 // pred_check_branch
        %179 = sbr.rel (%p176) target = $region28
      $region27: #{tpu_custom_call.1} parent=5 // pred_region
        %s180 = ssub.s32 %s17, 1
        %s181 = sand.u32 %s44, 1
        %s182 = scalar_lea.sflag [#allocation4], %s181
        %s183 = sand.u32 %s44, 1
        %s184 = smul.addr %s183, 16
        %s185 = scalar_lea.vmem [#allocation3], %s184
        // Predicated region
        $region29: #{tpu_custom_call.1} parent=27 // pred_check
          %p186 = pneg %p57
        $region30: #{tpu_custom_call.1} parent=27 // pred_check_branch
          %188 = sbr.rel (%p186) target = $region32
        $region31: #{tpu_custom_call.1} parent=27 // pred_region
          %189 = dma.done %s182, 256
        $region32: #{tpu_custom_call.1} parent=27 // pred_fallthru
          _
        %s190 = sand.u32 %s72, 1
        %s191 = scalar_lea.sflag [#allocation7], %s190
        %s192 = sand.u32 %s72, 1
        %s193 = smul.addr %s192, 16
        %s194 = scalar_lea.vmem [#allocation6], %s193
        // Predicated region
        $region33: #{tpu_custom_call.1} parent=27 // pred_check
          %p195 = pneg %p85
        $region34: #{tpu_custom_call.1} parent=27 // pred_check_branch
          %197 = sbr.rel (%p195) target = $region36
        $region35: #{tpu_custom_call.1} parent=27 // pred_region
          %198 = dma.done %s191, 256
        $region36: #{tpu_custom_call.1} parent=27 // pred_fallthru
          _
        %s199 = sand.u32 %s44, 1
        %s200 = scalar_lea.sflag [#allocation4], %s199
        %s201 = sand.u32 %s44, 1
        %s202 = smul.addr %s201, 16
        %s203 = scalar_lea.vmem [#allocation3], %s202
        %p204 = pneg %p57
        %p205 = pneg %p54
        %s206 = sand.u32 %s72, 1
        %s207 = scalar_lea.sflag [#allocation7], %s206
        %s208 = sand.u32 %s72, 1
        %s209 = smul.addr %s208, 16
        %s210 = scalar_lea.vmem [#allocation6], %s209
        %p211 = pneg %p85
        %p212 = pneg %p82
        %p213 = pneg %p111
        %p214 = pneg %p108
        %s215 = sand.u32 %s98, 1
        %s216 = scalar_lea.sflag [#allocation5], %s215
        %s217 = sand.u32 %s98, 1
        %s218 = smul.addr %s217, 8
        %s219 = scalar_lea.vmem [#allocation8], %s218
        %v220 = vld [vmem:[%s185] sm:$0xf]
        %v221 = vld [vmem:[%s185 + $0x4] sm:$0xf]
        %v222 = vld [vmem:[%s185 + $0x8] sm:$0xf]
        %v223 = vld [vmem:[%s185 + $0xc] sm:$0xf]
        %vm224 = vcmask 1043456
        %v225 = vsel %vm224, %v220, -inf
        %v226 = vsel %vm224, %v221, -inf
        %v227 = vsel %vm224, %v222, -inf
        %v228 = vsel %vm224, %v223, -inf
        %v229 = vmax.f32 %v225, %v226
        %v230 = vmax.f32 %v227, %v228
        %v231 = vmax.f32 %v229, %v230
        %v232 = vsub.f32 %v220, %v231
        %v233 = vsub.f32 %v221, %v231
        %v234 = vsub.f32 %v222, %v231
        %v235 = vsub.f32 %v223, %v231
        %v236 = vmul.f32 %v232, 1.442695
        %v237 = vpow.pop %v236
        %v238 = vmul.f32 %v233, 1.442695
        %v239 = vpow.pop %v238
        %v240 = vmul.f32 %v234, 1.442695
        %v241 = vpow.pop %v240
        %v242 = vmul.f32 %v235, 1.442695
        %v243 = vpow.pop %v242
        %v244 = vsel %vm224, %v237, 0.0
        %v245 = vsel %vm224, %v239, 0.0
        %v246 = vadd.f32 %v244, %v245
        %v247 = vsel %vm224, %v241, 0.0
        %v248 = vadd.f32 %v246, %v247
        %v249 = vsel %vm224, %v243, 0.0
        %v250 = vadd.f32 %v248, %v249
        %v251 = vlog2.pop %v250
        %v252 = vmul.f32 %v251, 0.6931472
        %v253 = vadd.f32 %v231, %v252
        %v254 = vsub.f32 %v220, %v253
        %v255 = vsub.f32 %v221, %v253
        %v256 = vsub.f32 %v222, %v253
        %v257 = vsub.f32 %v223, %v253
        %v258 = vld [vmem:[%s194] sm:$0xf]
        %v259 = vld [vmem:[%s194 + $0x4] sm:$0xf]
        %v260 = vld [vmem:[%s194 + $0x8] sm:$0xf]
        %v261 = vld [vmem:[%s194 + $0xc] sm:$0xf]
        %v262 = vmax.f32 %v258, 1e-06
        %v263 = vmax.f32 %v259, 1e-06
        %v264 = vmax.f32 %v260, 1e-06
        %v265 = vmax.f32 %v261, 1e-06
        %v266 = vlog2.pop %v262
        %v267 = vmul.f32 %v266, 0.6931472
        %v268 = vlog2.pop %v263
        %v269 = vmul.f32 %v268, 0.6931472
        %v270 = vlog2.pop %v264
        %v271 = vmul.f32 %v270, 0.6931472
        %v272 = vlog2.pop %v265
        %v273 = vmul.f32 %v272, 0.6931472
        %v274 = vsub.f32 %v267, %v254
        %v275 = vsub.f32 %v269, %v255
        %v276 = vsub.f32 %v271, %v256
        %v277 = vsub.f32 %v273, %v257
        %v278 = vmul.f32 %v262, %v274
        %v279 = vmul.f32 %v263, %v275
        %v280 = vmul.f32 %v264, %v276
        %v281 = vmul.f32 %v265, %v277
        %p282 = scmp.eq.s32.totalorder %s27, 0
        // Predicated region
        $region37: #{tpu_custom_call.1} parent=27 // pred_check
          %p283 = pneg %p282
        $region38: #{tpu_custom_call.1} parent=27 // pred_check_branch
          %285 = sbr.rel (%p283) target = $region40
        $region39: #{tpu_custom_call.1} parent=27 // pred_region
          %286 = vst [vmem:[#allocation2] sm:$0xf] 0.0
          %287 = vst [vmem:[#allocation2 + $0x4] sm:$0xf] 0.0
          %288 = vst [vmem:[#allocation2 + $0x8] sm:$0xf] 0.0
          %289 = vst [vmem:[#allocation2 + $0xc] sm:$0xf] 0.0
        $region40: #{tpu_custom_call.1} parent=27 // pred_fallthru
          _
        %v290 = vld [vmem:[#allocation2] sm:$0xf]
        %v291 = vld [vmem:[#allocation2 + $0x4] sm:$0xf]
        %v292 = vld [vmem:[#allocation2 + $0x8] sm:$0xf]
        %v293 = vld [vmem:[#allocation2 + $0xc] sm:$0xf]
        %v294 = vadd.f32 %v290, %v278
        %v295 = vadd.f32 %v291, %v279
        %v296 = vadd.f32 %v292, %v280
        %v297 = vadd.f32 %v293, %v281
        %298 = vst [vmem:[#allocation2] sm:$0xf] %v294
        %299 = vst [vmem:[#allocation2 + $0x4] sm:$0xf] %v295
        %300 = vst [vmem:[#allocation2 + $0x8] sm:$0xf] %v296
        %301 = vst [vmem:[#allocation2 + $0xc] sm:$0xf] %v297
        // Predicated region
        $region41: #{tpu_custom_call.1} parent=27 // pred_check
          %p302 = pneg %p282
        $region42: #{tpu_custom_call.1} parent=27 // pred_check_branch
          %304 = sbr.rel (%p302) target = $region44
        $region43: #{tpu_custom_call.1} parent=27 // pred_region
          %v305 = vld [vmem:[#allocation2] sm:$0xf]
          %v306 = vld [vmem:[#allocation2 + $0x4] sm:$0xf]
          %v307 = vld [vmem:[#allocation2 + $0x8] sm:$0xf]
          %v308 = vld [vmem:[#allocation2 + $0xc] sm:$0xf]
          %v309 = vsel %vm224, %v305, 0.0
          %v310 = vsel %vm224, %v306, 0.0
          %v311 = vadd.f32 %v309, %v310
          %v312 = vsel %vm224, %v307, 0.0
          %v313 = vadd.f32 %v311, %v312
          %v314 = vsel %vm224, %v308, 0.0
          %v315 = vadd.f32 %v313, %v314
          %316 = vadd.xlane.f32.xlu0 %v315
          %v317 = vpop.xlane.xlu0 %316
          %v318 = vrot.slane %v317, 4
          %v319 = vadd.f32 %v317, %v318
          %v320 = vrot.slane %v319, 2
          %v321 = vadd.f32 %v319, %v320
          %v322 = vrot.slane %v321, 1
          %v323 = vadd.f32 %v321, %v322
          %s324 = vtos %v323
          %v325 = vlaneseq
          %v326 = vshrl.u32 %v325, 7
          %v327 = vlaneseq
          %v328 = vand.u32 %v327, 127
          %vm329 = vcmp.eq.s32.totalorder %v326, 0
          %vm330 = vcmp.eq.s32.totalorder %v328, 0
          %vm331 = vmand %vm329, %vm330
          %v332 = vstv %s324
          %v333 = vsel %vm331, %v332, 0.0
          %334 = vst [vmem:[%s219] sm:$0xff] %v333
        $region44: #{tpu_custom_call.1} parent=27 // pred_fallthru
          _
        %s335 = sand.u32 %s98, 1
        %s336 = scalar_lea.sflag [#allocation5], %s335
        %s337 = sand.u32 %s98, 1
        %s338 = smul.addr %s337, 8
        %s339 = scalar_lea.vmem [#allocation8], %s338
        // Predicated region
        $region45: #{tpu_custom_call.1} parent=27 // pred_check
          %p340 = pneg %p108
        $region46: #{tpu_custom_call.1} parent=27 // pred_check_branch
          %342 = sbr.rel (%p340) target = $region48
        $region47: #{tpu_custom_call.1} parent=27 // pred_region
          %s344 = ssub.s32 128, 128
          %345 = vsyncadd %s336, %s344
          %s346 = smul.addr %s26, 128
          %s347 = scalar_lea.hbm %s2, %s346
          %s349 = sshll.u32 %s339, 4
          %s350 = int_to_ptr.vmem [resolvable:$true] %s349
          %352 = dma.vmem_to_hbm [thread:$0]  %s350, 128, %s347, %s336
        $region48: #{tpu_custom_call.1} parent=27 // pred_fallthru
          _
      $region28: #{tpu_custom_call.1} parent=5 // pred_fallthru
        _
      %p353 = scmp.le.s32.totalorder 2, %s17
      // Predicated region
      $region49: #{tpu_custom_call.1} parent=5 // pred_check
        %p354 = pneg %p353
      $region50: #{tpu_custom_call.1} parent=5 // pred_check_branch
        %356 = sbr.rel (%p354) target = $region52
      $region51: #{tpu_custom_call.1} parent=5 // pred_region
        %s357 = ssub.s32 %s17, 2
        // Predicated region
        $region53: #{tpu_custom_call.1} parent=51 // pred_check
          %p358 = pneg %p114
        $region54: #{tpu_custom_call.1} parent=51 // pred_check_branch
          %360 = sbr.rel (%p358) target = $region56
        $region55: #{tpu_custom_call.1} parent=51 // pred_region
          %s361 = sand.u32 %s99, 1
          %s362 = scalar_lea.sflag [#allocation5], %s361
          %s363 = sand.u32 %s99, 1
          %s364 = smul.addr %s363, 8
          %s365 = scalar_lea.vmem [#allocation8], %s364
          %366 = dma.done %s362, 128
        $region56: #{tpu_custom_call.1} parent=51 // pred_fallthru
          _
      $region52: #{tpu_custom_call.1} parent=5 // pred_fallthru
        _
    $region6: #{tpu_custom_call.1} parent=1 // loop_footer
      %s21 = sadd.s32 1, %s17
    $region7: #{tpu_custom_call.1} parent=1 // loop_footer_branch
      %16 = sbr.rel target = $region3
    $region8: #{tpu_custom_call.1} parent=1 // loop_exit
      _
    %367 = vsyncpa [#allocation4], 1
    %s368 = scalar_lea.sflag [#allocation4], 1
    %369 = vsyncpa %s368, 1
    %370 = vsyncpa [#allocation7], 1
    %s371 = scalar_lea.sflag [#allocation7], 1
    %372 = vsyncpa %s371, 1
    %373 = vsyncpa [#allocation5], 1
    %s374 = scalar_lea.sflag [#allocation5], 1
    %375 = vsyncpa %s374, 1

</llo_original>
